<compile_context>
chip_gen: v7x
topology: tpu7x:2x2x1
jax: 0.10.0
libtpu: 0.0.40
codegen_flags: <defaults>
</compile_context>

<pallas_src>
import jax
import jax.numpy as jnp
from jax import lax
from jax.experimental import pallas as pl
from jax.experimental.pallas import tpu as pltpu


def _silu(x):
    # SiLU(x) = x * sigmoid(x); logistic lowers to the EUP (separate slot).
    return x * lax.logistic(x)


def _vector_field_kernel(y_ref, w0_ref, b0_ref, w1_ref, b1_ref, w2_ref, b2_ref,
                         out_ref):
    """Fused 3-layer MLP: tanh(silu(silu(y@W0+b0)@W1+b1)@W2+b2).

    Weights arrive already in the desired MXU operand dtype (f32 or bf16);
    biases stay f32.  Accumulation is always f32.
    """
    cdt = w0_ref.dtype                       # compute (MXU operand) dtype
    y = y_ref[...].astype(cdt)

    # Layer 0: in -> width, SiLU
    h = jnp.dot(y, w0_ref[...], preferred_element_type=jnp.float32)
    h = _silu(h + b0_ref[...])

    # Layer 1: width -> width, SiLU
    h = jnp.dot(h.astype(cdt), w1_ref[...], preferred_element_type=jnp.float32)
    h = _silu(h + b1_ref[...])

    # Layer 2: width -> out, tanh (final activation)
    o = jnp.dot(h.astype(cdt), w2_ref[...], preferred_element_type=jnp.float32)
    o = jnp.tanh(o + b2_ref[...])

    out_ref[...] = o.astype(out_ref.dtype)


def prepare_params(params, compute_dtype=jnp.float32):
    """Pre-cast weights (once, outside the kernel) to the MXU operand dtype.

    Biases are kept in f32 — they are added to the f32 accumulator anyway.
    """
    out = {}
    for k, v in params.items():
        if k.startswith("w"):
            out[k] = v.astype(compute_dtype)
        else:
            out[k] = v.astype(jnp.float32)
    return out


def vector_field_forward(y, params, *, batch_tile=512):
    """Run the VectorField MLP as a single fused Pallas kernel.

    y:      (B, in_size) float32
    params: dict with w0,b0,w1,b1,w2,b2 (weights (in,out) in f32 or bf16,
            biases (1,out) f32) — see prepare_params.
    batch_tile: max rows per grid step (rounded to a multiple of 8).
    """
    B, in_size = y.shape
    w0, b0 = params["w0"], params["b0"]
    w1, b1 = params["w1"], params["b1"]
    w2, b2 = params["w2"], params["b2"]
    width = w0.shape[1]
    out_size = w2.shape[1]

    # --- batch tiling: big tiles, ragged last block handled by Pallas ---
    tb = ((min(int(batch_tile), B) + 7) // 8) * 8
    tb = max(8, tb)
    steps = pl.cdiv(B, tb)
    if steps > 1 and steps % 2 == 1:
        # Prefer an even number of grid steps so the "parallel" batch axis
        # shards evenly across the two TensorCores on v7x.
        tb = max(8, ((pl.cdiv(B, steps + 1) + 7) // 8) * 8)
        steps = pl.cdiv(B, tb)

    # Full-array blocks for the (tiny, resident) weights/biases.
    def full(arr):
        return pl.BlockSpec(arr.shape, lambda i: (0, 0))

    # Advisory cost estimate so XLA schedules surrounding solver ops sanely.
    weight_bytes = sum(int(a.size) * a.dtype.itemsize
                       for a in (w0, b0, w1, b1, w2, b2))
    cost = pl.CostEstimate(
        flops=2 * B * (in_size * width + width * width + width * out_size),
        transcendentals=B * (2 * width + out_size),
        bytes_accessed=4 * B * (in_size + out_size) + weight_bytes,
    )

    out = pl.pallas_call(
        _vector_field_kernel,
        out_shape=jax.ShapeDtypeStruct((B, out_size), y.dtype),
        grid_spec=pltpu.PrefetchScalarGridSpec(
            num_scalar_prefetch=0,
            grid=(steps,),
            in_specs=[
                pl.BlockSpec((tb, in_size), lambda i: (i, 0)),  # y batch tile
                full(w0), full(b0),
                full(w1), full(b1),
                full(w2), full(b2),
            ],
            out_specs=pl.BlockSpec((tb, out_size), lambda i: (i, 0)),
        ),
        compiler_params=pltpu.CompilerParams(
            dimension_semantics=("parallel",)),
        cost_estimate=cost,
    )(y, w0, b0, w1, b1, w2, b2)

    return out


def init_vector_field_params(key, in_size, out_size, width, depth, scale=1.0):
    """Deterministic parameter init (PyTorch-Linear-style uniform), then
    divided by `scale` exactly as VectorField._scale_parameters does."""
    assert depth == 2, "this script builds the depth=2 (3-layer) fused kernel"
    dims = [(in_size, width), (width, width), (width, out_size)]
    params = {}
    keys = jax.random.split(key, 2 * len(dims))
    for li, (fan_in, fan_out) in enumerate(dims):
        bound = 1.0 / (fan_in ** 0.5)
        w = jax.random.uniform(keys[2 * li], (fan_in, fan_out),
                               minval=-bound, maxval=bound, dtype=jnp.float32)
        b = jax.random.uniform(keys[2 * li + 1], (1, fan_out),
                               minval=-bound, maxval=bound, dtype=jnp.float32)
        params[f"w{li}"] = w / scale
        params[f"b{li}"] = b / scale
    return params


def vector_field_reference(y, params):
    """Pure-JAX reference of the same forward pass (for verification)."""
    h = jax.nn.silu(y @ params["w0"].astype(jnp.float32) + params["b0"])
    h = jax.nn.silu(h @ params["w1"].astype(jnp.float32) + params["b1"])
    return jnp.tanh(h @ params["w2"].astype(jnp.float32) + params["b2"])


if __name__ == "__main__":
    # Shapes consistent with a Log-NCDE vector field:
    #   hidden state size (in_size) = 16, vector-field output = 16,
    #   MLP width = 64, depth = 2.
    in_size, out_size, width, depth = 16, 16, 64, 2
    scale = 2.0

    key = jax.random.PRNGKey(0)
    kp, ky1, ky2 = jax.random.split(key, 3)
    raw_params = init_vector_field_params(kp, in_size, out_size, width, depth,
                                          scale=scale)

    # f32 weights (exact path, recommended on v5e).
    params_f32 = prepare_params(raw_params, jnp.float32)
    # bf16 MXU operands (v6e/v7x), f32 accumulation — cast done ONCE here.
    params_bf16 = prepare_params(raw_params, jnp.bfloat16)

    # 1) Small batch (B=8), exact f32 path.
    y_small = jax.random.normal(ky1, (8, in_size), dtype=jnp.float32)
    out_small = jax.block_until_ready(vector_field_forward(y_small, params_f32))
    ref_small = vector_field_reference(y_small, raw_params)
    assert out_small.shape == (8, out_size)
    assert jnp.allclose(out_small, ref_small, atol=1e-5, rtol=1e-5), \
        "f32 small-batch mismatch vs JAX ref"

    # 2) Large, non-multiple-of-tile batch — exercises the ragged last block
    #    (no wrapper pad/slice) and a multi-step "parallel" grid.
    y_big = jax.random.normal(ky2, (1000, in_size), dtype=jnp.float32)
    out_big = jax.block_until_ready(
        vector_field_forward(y_big, params_f32, batch_tile=512))
    ref_big = vector_field_reference(y_big, raw_params)
    assert out_big.shape == (1000, out_size)
    assert jnp.allclose(out_big, ref_big, atol=1e-5, rtol=1e-5), \
        "f32 big-batch mismatch vs JAX ref"

    # 3) bf16 matmul operands (pre-cast weights, f32 accumulation).
    out_bf16 = jax.block_until_ready(
        vector_field_forward(y_big, params_bf16, batch_tile=512))
    assert out_bf16.shape == (1000, out_size)
    assert jnp.allclose(out_bf16, ref_big, atol=3e-2, rtol=3e-2), \
        "bf16 big-batch mismatch vs JAX ref"

    print("KERNEL_OK")
</pallas_src>

<mosaic_0001>
module attributes {stable_mosaic.version = 11 : i64} {
  func.func @_vector_field_kernel(%arg0: i32, %arg1: memref<8x16xf32, #tpu.memory_space<vmem>>, %arg2: memref<16x64xf32, #tpu.memory_space<vmem>>, %arg3: memref<1x64xf32, #tpu.memory_space<vmem>>, %arg4: memref<64x64xf32, #tpu.memory_space<vmem>>, %arg5: memref<1x64xf32, #tpu.memory_space<vmem>>, %arg6: memref<64x16xf32, #tpu.memory_space<vmem>>, %arg7: memref<1x16xf32, #tpu.memory_space<vmem>>, %arg8: memref<8x16xf32, #tpu.memory_space<vmem>>) attributes {dimension_semantics = [#tpu.dimension_semantics<parallel>], iteration_bounds = array<i64: 1>, scalar_prefetch = 0 : i64, scratch_operands = 0 : i64, tpu.core_type = #tpu.core_type<tc>, window_params = [{transform_indices = @transform_0, window_bounds = array<i64: 8, 16>}, {pipeline_mode = #tpu.pipeline_mode<synchronous>, transform_indices = @transform_1, window_bounds = array<i64: 16, 64>}, {pipeline_mode = #tpu.pipeline_mode<synchronous>, transform_indices = @transform_2, window_bounds = array<i64: 1, 64>}, {pipeline_mode = #tpu.pipeline_mode<synchronous>, transform_indices = @transform_3, window_bounds = array<i64: 64, 64>}, {pipeline_mode = #tpu.pipeline_mode<synchronous>, transform_indices = @transform_4, window_bounds = array<i64: 1, 64>}, {pipeline_mode = #tpu.pipeline_mode<synchronous>, transform_indices = @transform_5, window_bounds = array<i64: 64, 16>}, {pipeline_mode = #tpu.pipeline_mode<synchronous>, transform_indices = @transform_6, window_bounds = array<i64: 1, 16>}, {transform_indices = @transform_7, window_bounds = array<i64: 8, 16>}]} {
    %c0 = arith.constant 0 : index
    %c0_0 = arith.constant 0 : index
    %0 = vector.load %arg1[%c0, %c0_0] : memref<8x16xf32, #tpu.memory_space<vmem>>, vector<8x16xf32>
    %c0_1 = arith.constant 0 : index
    %c0_2 = arith.constant 0 : index
    %1 = vector.load %arg2[%c0_1, %c0_2] : memref<16x64xf32, #tpu.memory_space<vmem>>, vector<16x64xf32>
    %cst = arith.constant dense<0.000000e+00> : vector<8x64xf32>
    %2 = tpu.matmul %0, %1, %cst {dimension_numbers = #tpu.dot_dimension_numbers<[1], [0], [0], [1], [0, 0, 1, 1], [], []>} : vector<8x16xf32>, vector<16x64xf32>, vector<8x64xf32> -> vector<8x64xf32>
    %c0_3 = arith.constant 0 : index
    %c0_4 = arith.constant 0 : index
    %3 = vector.load %arg3[%c0_3, %c0_4] : memref<1x64xf32, #tpu.memory_space<vmem>>, vector<1x64xf32>
    %4 = vector.broadcast %3 : vector<1x64xf32> to vector<8x64xf32>
    %5 = arith.addf %2, %4 : vector<8x64xf32>
    %6 = arith.negf %5 : vector<8x64xf32>
    %7 = math.exp %6 : vector<8x64xf32>
    %cst_5 = arith.constant 1.000000e+00 : f32
    %8 = vector.broadcast %cst_5 : f32 to vector<8x64xf32>
    %9 = arith.addf %8, %7 : vector<8x64xf32>
    %10 = arith.divf %8, %9 : vector<8x64xf32>
    %11 = arith.mulf %5, %10 : vector<8x64xf32>
    %c0_6 = arith.constant 0 : index
    %c0_7 = arith.constant 0 : index
    %12 = vector.load %arg4[%c0_6, %c0_7] : memref<64x64xf32, #tpu.memory_space<vmem>>, vector<64x64xf32>
    %cst_8 = arith.constant dense<0.000000e+00> : vector<8x64xf32>
    %13 = tpu.matmul %11, %12, %cst_8 {dimension_numbers = #tpu.dot_dimension_numbers<[1], [0], [0], [1], [0, 0, 1, 1], [], []>} : vector<8x64xf32>, vector<64x64xf32>, vector<8x64xf32> -> vector<8x64xf32>
    %c0_9 = arith.constant 0 : index
    %c0_10 = arith.constant 0 : index
    %14 = vector.load %arg5[%c0_9, %c0_10] : memref<1x64xf32, #tpu.memory_space<vmem>>, vector<1x64xf32>
    %15 = vector.broadcast %14 : vector<1x64xf32> to vector<8x64xf32>
    %16 = arith.addf %13, %15 : vector<8x64xf32>
    %17 = arith.negf %16 : vector<8x64xf32>
    %18 = math.exp %17 : vector<8x64xf32>
    %cst_11 = arith.constant 1.000000e+00 : f32
    %19 = vector.broadcast %cst_11 : f32 to vector<8x64xf32>
    %20 = arith.addf %19, %18 : vector<8x64xf32>
    %21 = arith.divf %19, %20 : vector<8x64xf32>
    %22 = arith.mulf %16, %21 : vector<8x64xf32>
    %c0_12 = arith.constant 0 : index
    %c0_13 = arith.constant 0 : index
    %23 = vector.load %arg6[%c0_12, %c0_13] : memref<64x16xf32, #tpu.memory_space<vmem>>, vector<64x16xf32>
    %cst_14 = arith.constant dense<0.000000e+00> : vector<8x16xf32>
    %24 = tpu.matmul %22, %23, %cst_14 {dimension_numbers = #tpu.dot_dimension_numbers<[1], [0], [0], [1], [0, 0, 1, 1], [], []>} : vector<8x64xf32>, vector<64x16xf32>, vector<8x16xf32> -> vector<8x16xf32>
    %c0_15 = arith.constant 0 : index
    %c0_16 = arith.constant 0 : index
    %25 = vector.load %arg7[%c0_15, %c0_16] : memref<1x16xf32, #tpu.memory_space<vmem>>, vector<1x16xf32>
    %26 = vector.broadcast %25 : vector<1x16xf32> to vector<8x16xf32>
    %27 = arith.addf %24, %26 : vector<8x16xf32>
    %28 = math.tanh %27 : vector<8x16xf32>
    %c0_17 = arith.constant 0 : index
    %c0_18 = arith.constant 0 : index
    %29 = vector.load %arg8[%c0_17, %c0_18] : memref<8x16xf32, #tpu.memory_space<vmem>>, vector<8x16xf32>
    tpu.vector_store %arg8[%c0_17, %c0_18], %28 {strides = array<i32>} : memref<8x16xf32, #tpu.memory_space<vmem>>, vector<8x16xf32>,
    return
  }
  func.func @transform_0(%arg0: i32) -> (i32, i32) {
    %c0_i32 = arith.constant 0 : i32
    %c0_i32_0 = arith.constant 0 : i32
    return %arg0, %c0_i32 : i32, i32
  }
  func.func @transform_1(%arg0: i32) -> (i32, i32) {
    %c0_i32 = arith.constant 0 : i32
    %c0_i32_0 = arith.constant 0 : i32
    %c0_i32_1 = arith.constant 0 : i32
    return %c0_i32, %c0_i32_0 : i32, i32
  }
  func.func @transform_2(%arg0: i32) -> (i32, i32) {
    %c0_i32 = arith.constant 0 : i32
    %c0_i32_0 = arith.constant 0 : i32
    %c0_i32_1 = arith.constant 0 : i32
    return %c0_i32, %c0_i32_0 : i32, i32
  }
  func.func @transform_3(%arg0: i32) -> (i32, i32) {
    %c0_i32 = arith.constant 0 : i32
    %c0_i32_0 = arith.constant 0 : i32
    %c0_i32_1 = arith.constant 0 : i32
    return %c0_i32, %c0_i32_0 : i32, i32
  }
  func.func @transform_4(%arg0: i32) -> (i32, i32) {
    %c0_i32 = arith.constant 0 : i32
    %c0_i32_0 = arith.constant 0 : i32
    %c0_i32_1 = arith.constant 0 : i32
    return %c0_i32, %c0_i32_0 : i32, i32
  }
  func.func @transform_5(%arg0: i32) -> (i32, i32) {
    %c0_i32 = arith.constant 0 : i32
    %c0_i32_0 = arith.constant 0 : i32
    %c0_i32_1 = arith.constant 0 : i32
    return %c0_i32, %c0_i32_0 : i32, i32
  }
  func.func @transform_6(%arg0: i32) -> (i32, i32) {
    %c0_i32 = arith.constant 0 : i32
    %c0_i32_0 = arith.constant 0 : i32
    %c0_i32_1 = arith.constant 0 : i32
    return %c0_i32, %c0_i32_0 : i32, i32
  }
  func.func @transform_7(%arg0: i32) -> (i32, i32) {
    %c0_i32 = arith.constant 0 : i32
    %c0_i32_0 = arith.constant 0 : i32
    return %arg0, %c0_i32 : i32, i32
  }
}

</mosaic_0001>

<llo_original>
// kernel: tpu_custom_call.1
$region0: #{tpu_custom_call.1}
  #allocation0 [shape = 'u32[]', space=smem, size = 0x4, offset = 0x4, fixed_abs, tag = 'smem constant byte address 0x4 - core index']
  #allocation1 [shape = 'u32[144,128]{1,0:T(1,128)}', space=vmem, size = 0x12000, scoped, tag = 'internal scratch']
  %s0 = inlined_call_operand.hbm [shape: f32[8,16], index: 0, kind: input, shape index: {}]
  %s1 = inlined_call_operand.vmem [shape: f32[16,64], index: 1, kind: input, shape index: {}]
  %s2 = inlined_call_operand.vmem [shape: f32[1,64], index: 2, kind: input, shape index: {}]
  %s3 = inlined_call_operand.vmem [shape: f32[64,64], index: 3, kind: input, shape index: {}]
  %s4 = inlined_call_operand.vmem [shape: f32[1,64], index: 4, kind: input, shape index: {}]
  %s5 = inlined_call_operand.vmem [shape: f32[64,16], index: 5, kind: input, shape index: {}]
  %s6 = inlined_call_operand.vmem [shape: f32[1,16], index: 6, kind: input, shape index: {}]
  %s7 = inlined_call_operand.hbm [shape: f32[8,16], index: 7, kind: output, shape index: {}]
  %s8 = sld [smem:[#allocation0]]
  $region42: #{tpu_custom_call.1} parent=0
    _
  %s10 = ssub.s32 1, %s8
  %s11 = scalar_select 0, %s10, %s8
  $region1: #{tpu_custom_call.1} parent=0
    #allocation2 [shape = 'u8[4096]{0}', space=vmem, size = 0x1000, scoped, tag = 'input window, operand 0, single buffered']
    #allocation3 [shape = 's32[1]{0}', space=sflag, size = 0x4, scoped, tag = 'scoped memory for tpu_custom_call.1']
    #allocation4 [shape = 's32[1]{0}', space=sflag, size = 0x4, scoped, tag = 'scoped memory for tpu_custom_call.1']
    #allocation5 [shape = 'u8[4096]{0}', space=vmem, size = 0x1000, scoped, tag = 'output window, operand 0, single buffered']
    %12 = vsyncpa [#allocation3], 0
    %13 = vsyncpa [#allocation4], 0
    // Predicated region
    $region2: #{tpu_custom_call.1} parent=1 // pred_check
      _
    $region3: #{tpu_custom_call.1} parent=1 // pred_check_branch
      %15 = sbr.rel (0) target = $region5
    $region4: #{tpu_custom_call.1} parent=1 // pred_region
      %s17 = ssub.s32 128, 128
      %18 = vsyncadd [#allocation3], %s17
      %s20 = sshll.u32 [#allocation2], 4
      %s21 = int_to_ptr.vmem [resolvable:$true] %s20
      %23 = dma.hbm_to_vmem [thread:$0]  %s0, 128, %s21, [#allocation3]
    $region5: #{tpu_custom_call.1} parent=1 // pred_fallthru
      _
    // Predicated region
    $region6: #{tpu_custom_call.1} parent=1 // pred_check
      _
    $region7: #{tpu_custom_call.1} parent=1 // pred_check_branch
      %25 = sbr.rel (0) target = $region9
    $region8: #{tpu_custom_call.1} parent=1 // pred_region
      _
    $region9: #{tpu_custom_call.1} parent=1 // pred_fallthru
      _
    // Predicated region
    $region10: #{tpu_custom_call.1} parent=1 // pred_check
      _
    $region11: #{tpu_custom_call.1} parent=1 // pred_check_branch
      %27 = sbr.rel (0) target = $region13
    $region12: #{tpu_custom_call.1} parent=1 // pred_region
      _
    $region13: #{tpu_custom_call.1} parent=1 // pred_fallthru
      _
    // Predicated region
    $region14: #{tpu_custom_call.1} parent=1 // pred_check
      _
    $region15: #{tpu_custom_call.1} parent=1 // pred_check_branch
      %29 = sbr.rel (0) target = $region17
    $region16: #{tpu_custom_call.1} parent=1 // pred_region
      _
    $region17: #{tpu_custom_call.1} parent=1 // pred_fallthru
      _
    // Predicated region
    $region18: #{tpu_custom_call.1} parent=1 // pred_check
      _
    $region19: #{tpu_custom_call.1} parent=1 // pred_check_branch
      %31 = sbr.rel (0) target = $region21
    $region20: #{tpu_custom_call.1} parent=1 // pred_region
      _
    $region21: #{tpu_custom_call.1} parent=1 // pred_fallthru
      _
    // Predicated region
    $region22: #{tpu_custom_call.1} parent=1 // pred_check
      _
    $region23: #{tpu_custom_call.1} parent=1 // pred_check_branch
      %33 = sbr.rel (0) target = $region25
    $region24: #{tpu_custom_call.1} parent=1 // pred_region
      _
    $region25: #{tpu_custom_call.1} parent=1 // pred_fallthru
      _
    // Predicated region
    $region26: #{tpu_custom_call.1} parent=1 // pred_check
      _
    $region27: #{tpu_custom_call.1} parent=1 // pred_check_branch
      %35 = sbr.rel (0) target = $region29
    $region28: #{tpu_custom_call.1} parent=1 // pred_region
      _
    $region29: #{tpu_custom_call.1} parent=1 // pred_fallthru
      _
    // Predicated region
    $region30: #{tpu_custom_call.1} parent=1 // pred_check
      _
    $region31: #{tpu_custom_call.1} parent=1 // pred_check_branch
      %37 = sbr.rel (0) target = $region33
    $region32: #{tpu_custom_call.1} parent=1 // pred_region
      %38 = dma.done [#allocation3], 128
    $region33: #{tpu_custom_call.1} parent=1 // pred_fallthru
      _
    %v39 = vld [vmem:[#allocation2] sm:$0xff]
    %v40 = vld [vmem:[%s1] sm:$0xff]
    %v41 = vld [vmem:[%s1 + $0x8] sm:$0xff]
    %v42 = vld [vmem:[%s2] sm:$0x1]
    %v44 = vlaneseq
    %v45 = vshrl.u32 %v44, 7
    %v46 = vsub.s32 0, %v45
    %v47 = vrot.slane %v42, %v46
    %vm49 = vcmask 130048
    %v51 = vsel %vm49, %v39, 0
    %53 = vmatprep.subr.mxu0 0.0
    %54 = vmatpush1.msra.mxu0 %v40
    %55 = vmatprep.subr.mxu0 0.0
    %56 = vmatpush1.msra.mxu0 %v41
    %57 = vmatprep.subr.mxu0 0.0
    %58 = vmatpush1.msra.mxu0 0.0
    %59 = vmatprep.subr.mxu0 0.0
    %60 = vmatpush1.msra.mxu0 0.0
    %61 = vmatprep.subr.mxu0 0.0
    %62 = vmatpush1.msra.mxu0 0.0
    %63 = vmatprep.subr.mxu0 0.0
    %64 = vmatpush1.msra.mxu0 0.0
    %65 = vmatprep.subr.mxu0 0.0
    %66 = vmatpush1.msra.mxu0 0.0
    %67 = vmatprep.subr.mxu0 0.0
    %68 = vmatpush1.msra.mxu0 0.0
    %69 = vmatprep.subr.mxu0 0.0
    %70 = vmatpush1.msra.mxu0 0.0
    %71 = vmatprep.subr.mxu0 0.0
    %72 = vmatpush1.msra.mxu0 0.0
    %73 = vmatprep.subr.mxu0 0.0
    %74 = vmatpush1.msra.mxu0 0.0
    %75 = vmatprep.subr.mxu0 0.0
    %76 = vmatpush1.msra.mxu0 0.0
    %77 = vmatprep.subr.mxu0 0.0
    %78 = vmatpush1.msra.mxu0 0.0
    %79 = vmatprep.subr.mxu0 0.0
    %80 = vmatpush1.msra.mxu0 0.0
    %81 = vmatprep.subr.mxu0 0.0
    %82 = vmatpush1.msra.mxu0 0.0
    %83 = vmatprep.subr.mxu0 0.0
    %84 = vmatpush1.msra.mxu0 0.0
    %85 = vmatprep.subr.mxu0 0.0
    %86 = vmatpush1.msra.mxu0 0.0
    %87 = vmatprep.subr.mxu0 0.0
    %88 = vmatpush1.msra.mxu0 0.0
    %89 = vmatprep.subr.mxu0 0.0
    %90 = vmatpush1.msra.mxu0 0.0
    %91 = vmatprep.subr.mxu0 0.0
    %92 = vmatpush1.msra.mxu0 0.0
    %93 = vmatprep.subr.mxu0 0.0
    %94 = vmatpush1.msra.mxu0 0.0
    %95 = vmatprep.subr.mxu0 0.0
    %96 = vmatpush1.msra.mxu0 0.0
    %97 = vmatprep.subr.mxu0 0.0
    %98 = vmatpush1.msra.mxu0 0.0
    %99 = vmatprep.subr.mxu0 0.0
    %100 = vmatpush1.msra.mxu0 0.0
    %101 = vmatprep.subr.mxu0 0.0
    %102 = vmatpush1.msra.mxu0 0.0
    %103 = vmatprep.subr.mxu0 0.0
    %104 = vmatpush1.msra.mxu0 0.0
    %105 = vmatprep.subr.mxu0 0.0
    %106 = vmatpush1.msra.mxu0 0.0
    %107 = vmatprep.subr.mxu0 0.0
    %108 = vmatpush1.msra.mxu0 0.0
    %109 = vmatprep.subr.mxu0 0.0
    %110 = vmatpush1.msra.mxu0 0.0
    %111 = vmatprep.subr.mxu0 0.0
    %112 = vmatpush1.msra.mxu0 0.0
    %113 = vmatprep.subr.mxu0 0.0
    %114 = vmatpush1.msra.mxu0 0.0
    %115 = vmatprep.subr.mxu0 0.0
    %116 = vmatpush1.msra.mxu0 0.0
    %117 = vmatprep.mubr.f32.mxu0 0.0
    %118 = vmatmul.mubr.f32.gmra.mrb[0].mxu0 %v51
    %v119 = vpop.f32.mrb[0].mxu0
    %v120 = vadd.f32 %v47, %v119
    %v121 = vpop.f32.mrb[0].mxu0
    %122 = vdwg.mxu0
    %v123 = vxor.u32 %v120, 2147483648
    %v124 = vmul.f32 %v123, 1.442695
    %v125 = vpow.pop %v124
    %v126 = vadd.f32 %v125, 1.0
    %v127 = vrcp.pop %v126
    %v128 = vmul.f32 1.0, %v127
    %v129 = vmul.f32 %v120, %v128
    %v130 = vld [vmem:[%s3] sm:$0xff]
    %v131 = vld [vmem:[%s3 + $0x8] sm:$0xff]
    %v132 = vld [vmem:[%s3 + $0x10] sm:$0xff]
    %v133 = vld [vmem:[%s3 + $0x18] sm:$0xff]
    %v134 = vld [vmem:[%s3 + $0x20] sm:$0xff]
    %v135 = vld [vmem:[%s3 + $0x28] sm:$0xff]
    %v136 = vld [vmem:[%s3 + $0x30] sm:$0xff]
    %v137 = vld [vmem:[%s3 + $0x38] sm:$0xff]
    %v138 = vld [vmem:[%s4] sm:$0x1]
    %v140 = vlaneseq
    %v141 = vshrl.u32 %v140, 7
    %v142 = vsub.s32 0, %v141
    %v143 = vrot.slane %v138, %v142
    %vm145 = vcmask 523264
    %v147 = vsel %vm145, %v129, 0
    %149 = vmatprep.subr.mxu0 0.0
    %150 = vmatpush1.msra.mxu0 %v130
    %151 = vmatprep.subr.mxu0 0.0
    %152 = vmatpush1.msra.mxu0 %v131
    %153 = vmatprep.subr.mxu0 0.0
    %154 = vmatpush1.msra.mxu0 %v132
    %155 = vmatprep.subr.mxu0 0.0
    %156 = vmatpush1.msra.mxu0 %v133
    %157 = vmatprep.subr.mxu0 0.0
    %158 = vmatpush1.msra.mxu0 %v134
    %159 = vmatprep.subr.mxu0 0.0
    %160 = vmatpush1.msra.mxu0 %v135
    %161 = vmatprep.subr.mxu0 0.0
    %162 = vmatpush1.msra.mxu0 %v136
    %163 = vmatprep.subr.mxu0 0.0
    %164 = vmatpush1.msra.mxu0 %v137
    %165 = vmatprep.subr.mxu0 0.0
    %166 = vmatpush1.msra.mxu0 0.0
    %167 = vmatprep.subr.mxu0 0.0
    %168 = vmatpush1.msra.mxu0 0.0
    %169 = vmatprep.subr.mxu0 0.0
    %170 = vmatpush1.msra.mxu0 0.0
    %171 = vmatprep.subr.mxu0 0.0
    %172 = vmatpush1.msra.mxu0 0.0
    %173 = vmatprep.subr.mxu0 0.0
    %174 = vmatpush1.msra.mxu0 0.0
    %175 = vmatprep.subr.mxu0 0.0
    %176 = vmatpush1.msra.mxu0 0.0
    %177 = vmatprep.subr.mxu0 0.0
    %178 = vmatpush1.msra.mxu0 0.0
    %179 = vmatprep.subr.mxu0 0.0
    %180 = vmatpush1.msra.mxu0 0.0
    %181 = vmatprep.subr.mxu0 0.0
    %182 = vmatpush1.msra.mxu0 0.0
    %183 = vmatprep.subr.mxu0 0.0
    %184 = vmatpush1.msra.mxu0 0.0
    %185 = vmatprep.subr.mxu0 0.0
    %186 = vmatpush1.msra.mxu0 0.0
    %187 = vmatprep.subr.mxu0 0.0
    %188 = vmatpush1.msra.mxu0 0.0
    %189 = vmatprep.subr.mxu0 0.0
    %190 = vmatpush1.msra.mxu0 0.0
    %191 = vmatprep.subr.mxu0 0.0
    %192 = vmatpush1.msra.mxu0 0.0
    %193 = vmatprep.subr.mxu0 0.0
    %194 = vmatpush1.msra.mxu0 0.0
    %195 = vmatprep.subr.mxu0 0.0
    %196 = vmatpush1.msra.mxu0 0.0
    %197 = vmatprep.subr.mxu0 0.0
    %198 = vmatpush1.msra.mxu0 0.0
    %199 = vmatprep.subr.mxu0 0.0
    %200 = vmatpush1.msra.mxu0 0.0
    %201 = vmatprep.subr.mxu0 0.0
    %202 = vmatpush1.msra.mxu0 0.0
    %203 = vmatprep.subr.mxu0 0.0
    %204 = vmatpush1.msra.mxu0 0.0
    %205 = vmatprep.subr.mxu0 0.0
    %206 = vmatpush1.msra.mxu0 0.0
    %207 = vmatprep.subr.mxu0 0.0
    %208 = vmatpush1.msra.mxu0 0.0
    %209 = vmatprep.subr.mxu0 0.0
    %210 = vmatpush1.msra.mxu0 0.0
    %211 = vmatprep.subr.mxu0 0.0
    %212 = vmatpush1.msra.mxu0 0.0
    %213 = vmatprep.mubr.f32.mxu0 0.0
    %214 = vmatmul.mubr.f32.gmra.mrb[0].mxu0 %v147
    %v215 = vpop.f32.mrb[0].mxu0
    %v216 = vadd.f32 %v143, %v215
    %v217 = vpop.f32.mrb[0].mxu0
    %218 = vdwg.mxu0
    %v219 = vxor.u32 %v216, 2147483648
    %v220 = vmul.f32 %v219, 1.442695
    %v221 = vpow.pop %v220
    %v222 = vadd.f32 %v221, 1.0
    %v223 = vrcp.pop %v222
    %v224 = vmul.f32 1.0, %v223
    %v225 = vmul.f32 %v216, %v224
    %v226 = vld [vmem:[%s5] sm:$0xff]
    %v227 = vld [vmem:[%s5 + $0x8] sm:$0xff]
    %v228 = vld [vmem:[%s5 + $0x10] sm:$0xff]
    %v229 = vld [vmem:[%s5 + $0x18] sm:$0xff]
    %v230 = vld [vmem:[%s5 + $0x20] sm:$0xff]
    %v231 = vld [vmem:[%s5 + $0x28] sm:$0xff]
    %v232 = vld [vmem:[%s5 + $0x30] sm:$0xff]
    %v233 = vld [vmem:[%s5 + $0x38] sm:$0xff]
    %v234 = vld [vmem:[%s6] sm:$0x1]
    %v236 = vlaneseq
    %v237 = vshrl.u32 %v236, 7
    %v238 = vsub.s32 0, %v237
    %v239 = vrot.slane %v234, %v238
    %v242 = vsel %vm145, %v225, 0
    %244 = vmatprep.subr.mxu0 0.0
    %245 = vmatpush1.msra.mxu0 %v226
    %246 = vmatprep.subr.mxu0 0.0
    %247 = vmatpush1.msra.mxu0 %v227
    %248 = vmatprep.subr.mxu0 0.0
    %249 = vmatpush1.msra.mxu0 %v228
    %250 = vmatprep.subr.mxu0 0.0
    %251 = vmatpush1.msra.mxu0 %v229
    %252 = vmatprep.subr.mxu0 0.0
    %253 = vmatpush1.msra.mxu0 %v230
    %254 = vmatprep.subr.mxu0 0.0
    %255 = vmatpush1.msra.mxu0 %v231
    %256 = vmatprep.subr.mxu0 0.0
    %257 = vmatpush1.msra.mxu0 %v232
    %258 = vmatprep.subr.mxu0 0.0
    %259 = vmatpush1.msra.mxu0 %v233
    %260 = vmatprep.subr.mxu0 0.0
    %261 = vmatpush1.msra.mxu0 0.0
    %262 = vmatprep.subr.mxu0 0.0
    %263 = vmatpush1.msra.mxu0 0.0
    %264 = vmatprep.subr.mxu0 0.0
    %265 = vmatpush1.msra.mxu0 0.0
    %266 = vmatprep.subr.mxu0 0.0
    %267 = vmatpush1.msra.mxu0 0.0
    %268 = vmatprep.subr.mxu0 0.0
    %269 = vmatpush1.msra.mxu0 0.0
    %270 = vmatprep.subr.mxu0 0.0
    %271 = vmatpush1.msra.mxu0 0.0
    %272 = vmatprep.subr.mxu0 0.0
    %273 = vmatpush1.msra.mxu0 0.0
    %274 = vmatprep.subr.mxu0 0.0
    %275 = vmatpush1.msra.mxu0 0.0
    %276 = vmatprep.subr.mxu0 0.0
    %277 = vmatpush1.msra.mxu0 0.0
    %278 = vmatprep.subr.mxu0 0.0
    %279 = vmatpush1.msra.mxu0 0.0
    %280 = vmatprep.subr.mxu0 0.0
    %281 = vmatpush1.msra.mxu0 0.0
    %282 = vmatprep.subr.mxu0 0.0
    %283 = vmatpush1.msra.mxu0 0.0
    %284 = vmatprep.subr.mxu0 0.0
    %285 = vmatpush1.msra.mxu0 0.0
    %286 = vmatprep.subr.mxu0 0.0
    %287 = vmatpush1.msra.mxu0 0.0
    %288 = vmatprep.subr.mxu0 0.0
    %289 = vmatpush1.msra.mxu0 0.0
    %290 = vmatprep.subr.mxu0 0.0
    %291 = vmatpush1.msra.mxu0 0.0
    %292 = vmatprep.subr.mxu0 0.0
    %293 = vmatpush1.msra.mxu0 0.0
    %294 = vmatprep.subr.mxu0 0.0
    %295 = vmatpush1.msra.mxu0 0.0
    %296 = vmatprep.subr.mxu0 0.0
    %297 = vmatpush1.msra.mxu0 0.0
    %298 = vmatprep.subr.mxu0 0.0
    %299 = vmatpush1.msra.mxu0 0.0
    %300 = vmatprep.subr.mxu0 0.0
    %301 = vmatpush1.msra.mxu0 0.0
    %302 = vmatprep.subr.mxu0 0.0
    %303 = vmatpush1.msra.mxu0 0.0
    %304 = vmatprep.subr.mxu0 0.0
    %305 = vmatpush1.msra.mxu0 0.0
    %306 = vmatprep.subr.mxu0 0.0
    %307 = vmatpush1.msra.mxu0 0.0
    %308 = vmatprep.mubr.f32.mxu0 0.0
    %309 = vmatmul.mubr.f32.gmra.mrb[0].mxu0 %v242
    %v310 = vpop.f32.mrb[0].mxu0
    %v311 = vadd.f32 %v239, %v310
    %v312 = vpop.f32.mrb[0].mxu0
    %313 = vdwg.mxu0
    %v314 = vtanh.pop %v311
    %315 = vst.msk [vmem:[#allocation5] sm:$0xff] %vm49, %v314
    // Predicated region
    $region34: #{tpu_custom_call.1} parent=1 // pred_check
      _
    $region35: #{tpu_custom_call.1} parent=1 // pred_check_branch
      %317 = sbr.rel (0) target = $region37
    $region36: #{tpu_custom_call.1} parent=1 // pred_region
      %s319 = ssub.s32 128, 128
      %320 = vsyncadd [#allocation4], %s319
      %s322 = sshll.u32 [#allocation5], 4
      %s323 = int_to_ptr.vmem [resolvable:$true] %s322
      %325 = dma.vmem_to_hbm [thread:$0]  %s323, 128, %s7, [#allocation4]
    $region37: #{tpu_custom_call.1} parent=1 // pred_fallthru
      _
    // Predicated region
    $region38: #{tpu_custom_call.1} parent=1 // pred_check
      _
    $region39: #{tpu_custom_call.1} parent=1 // pred_check_branch
      %327 = sbr.rel (0) target = $region41
    $region40: #{tpu_custom_call.1} parent=1 // pred_region
      %328 = dma.done [#allocation4], 128
    $region41: #{tpu_custom_call.1} parent=1 // pred_fallthru
      _
    %329 = vsyncpa [#allocation3], 1
    %330 = vsyncpa [#allocation4], 1

</llo_original>
